<compile_context>
chip_gen: v5e
topology: v5e:2x2
jax: 0.10.0
libtpu: 0.0.40
codegen_flags: <defaults>
</compile_context>

<pallas_src>
import functools

import jax
import jax.numpy as jnp
from jax.experimental import pallas as pl
from jax.experimental.pallas import tpu as pltpu

IN_DIM = 4        # CartPole observation size
HID = 128         # hidden width (lane-aligned)
OUT_DIM = 2       # number of actions
PAD = 128         # padded feature / output width


def qnet_kernel(x_ref, w_ref, b_ref, o_ref):
    # x_ref: (TILE_B, 128) feature-padded input block
    # w_ref: (3, 128, 128) packed weights (resident in VMEM across the grid)
    # b_ref: (8, 128)      packed biases  (resident in VMEM across the grid)
    # o_ref: (TILE_B, 128) lane-dense output block (cols >= 2 are zero)
    x = x_ref[...]
    b = b_ref[...]                                    # single 4 KiB load
    b1 = b[0:1, :]
    b2 = b[1:2, :]
    b3 = b[2:3, :]

    # fc1 + ReLU  (K padded 4->128; pad rows of w1 are zero, so result is exact)
    h1 = jnp.dot(x, w_ref[0], preferred_element_type=jnp.float32)
    h1 = jnp.maximum(h1 + b1, 0.0)
    # fc2 + ReLU
    h2 = jnp.dot(h1, w_ref[1], preferred_element_type=jnp.float32)
    h2 = jnp.maximum(h2 + b2, 0.0)
    # fc3 (N padded 2->128; pad cols of w3 and b3 are zero)
    out = jnp.dot(h2, w_ref[2], preferred_element_type=jnp.float32)
    o_ref[...] = (out + b3).astype(o_ref.dtype)


@functools.partial(jax.jit, static_argnames=("tile_b",))
def qnet_forward(x, packed_params, *, tile_b=256):
    """x: (B, 4) float32. Returns (B, 2) float32 Q-values."""
    w_packed, b_packed = packed_params
    B = x.shape[0]

    # Pick a batch tile: up to `tile_b`, but never smaller than 8 sublanes.
    tb = min(tile_b, max(8, ((B + 7) // 8) * 8))
    b_pad = ((B + tb - 1) // tb) * tb
    num_blocks = b_pad // tb

    # Zero-pad batch to a multiple of tb and features 4 -> 128.
    x_p = jnp.zeros((b_pad, PAD), jnp.float32).at[:B, :IN_DIM].set(x)

    itemsize = jnp.dtype(w_packed.dtype).itemsize
    cost = pl.CostEstimate(
        flops=2 * b_pad * (3 * PAD * PAD),
        transcendentals=0,
        bytes_accessed=(x_p.size * 4
                        + w_packed.size * itemsize
                        + b_packed.size * itemsize
                        + b_pad * PAD * 4),
    )

    out_padded = pl.pallas_call(
        qnet_kernel,
        out_shape=jax.ShapeDtypeStruct((b_pad, PAD), jnp.float32),
        grid_spec=pltpu.PrefetchScalarGridSpec(
            num_scalar_prefetch=0,
            grid=(num_blocks,),
            in_specs=[
                pl.BlockSpec((tb, PAD), lambda i: (i, 0)),        # x: tiled over B
                pl.BlockSpec((3, PAD, PAD), lambda i: (0, 0, 0)),  # weights: resident
                pl.BlockSpec((8, PAD), lambda i: (0, 0)),          # biases: resident
            ],
            out_specs=pl.BlockSpec((tb, PAD), lambda i: (i, 0)),   # lane-dense output
        ),
        compiler_params=pltpu.CompilerParams(
            dimension_semantics=("parallel",),   # v7x: 2 TCs split the batch grid
        ),
        cost_estimate=cost,
    )(x_p, w_packed, b_packed)

    return out_padded[:B, :OUT_DIM]


def init_params(key):
    """PyTorch nn.Linear default init: U(-1/sqrt(fan_in), 1/sqrt(fan_in)).
    Weights stored as (in_features, out_features) so y = x @ W + b."""
    k1, k2, k3, k4, k5, k6 = jax.random.split(key, 6)

    def uni(k, shape, fan_in):
        bound = 1.0 / jnp.sqrt(jnp.float32(fan_in))
        return jax.random.uniform(k, shape, jnp.float32, -bound, bound)

    w1 = uni(k1, (IN_DIM, HID), IN_DIM)
    b1 = uni(k2, (HID,), IN_DIM)
    w2 = uni(k3, (HID, HID), HID)
    b2 = uni(k4, (HID,), HID)
    w3 = uni(k5, (HID, OUT_DIM), HID)
    b3 = uni(k6, (OUT_DIM,), HID)
    return (w1, b1, w2, b2, w3, b3)


def pack_params(params, dtype=jnp.float32):
    """Pack the 6 parameter arrays into 2 lane-aligned tensors.
    Use dtype=jnp.bfloat16 on v6e/v7x to halve weight HBM/VMEM bytes."""
    w1, b1, w2, b2, w3, b3 = params
    w_packed = jnp.zeros((3, PAD, PAD), jnp.float32)
    w_packed = w_packed.at[0, :IN_DIM, :].set(w1)     # fc1: K zero-padded 4->128
    w_packed = w_packed.at[1].set(w2)                 # fc2: already 128x128
    w_packed = w_packed.at[2, :, :OUT_DIM].set(w3)    # fc3: N zero-padded 2->128
    b_packed = jnp.zeros((8, PAD), jnp.float32)
    b_packed = b_packed.at[0].set(b1)
    b_packed = b_packed.at[1].set(b2)
    b_packed = b_packed.at[2, :OUT_DIM].set(b3)
    return (w_packed.astype(dtype), b_packed.astype(dtype))


def qnet_reference(x, params):
    w1, b1, w2, b2, w3, b3 = params
    h1 = jnp.maximum(x @ w1 + b1, 0.0)
    h2 = jnp.maximum(h1 @ w2 + b2, 0.0)
    return h2 @ w3 + b3


if __name__ == "__main__":
    key = jax.random.PRNGKey(0)
    pkey, xkey, xkey2 = jax.random.split(key, 3)
    params = init_params(pkey)
    packed = pack_params(params)  # pack_params(params, jnp.bfloat16) on v6e/v7x

    # CartPole observation dim = 4; small batch of 8.
    x = jax.random.normal(xkey, (8, IN_DIM), dtype=jnp.float32)
    out = jax.block_until_ready(qnet_forward(x, packed))
    ref = qnet_reference(x, params)
    assert out.shape == (8, OUT_DIM)
    assert jnp.allclose(out, ref, atol=1e-5, rtol=1e-5), "mismatch vs reference (B=8)"

    # Also exercise the multi-block / batch-padding path (grid > 1).
    x_big = jax.random.normal(xkey2, (300, IN_DIM), dtype=jnp.float32)
    out_big = jax.block_until_ready(qnet_forward(x_big, packed))
    ref_big = qnet_reference(x_big, params)
    assert out_big.shape == (300, OUT_DIM)
    assert jnp.allclose(out_big, ref_big, atol=1e-5, rtol=1e-5), "mismatch vs reference (B=300)"

    print("KERNEL_OK")
</pallas_src>

<mosaic_0001>
module attributes {stable_mosaic.version = 11 : i64} {
  func.func @qnet_kernel(%arg0: i32, %arg1: memref<8x128xf32, #tpu.memory_space<vmem>>, %arg2: memref<3x128x128xf32, #tpu.memory_space<vmem>>, %arg3: memref<8x128xf32, #tpu.memory_space<vmem>>, %arg4: memref<8x128xf32, #tpu.memory_space<vmem>>) attributes {dimension_semantics = [#tpu.dimension_semantics<parallel>], iteration_bounds = array<i64: 1>, scalar_prefetch = 0 : i64, scratch_operands = 0 : i64, tpu.core_type = #tpu.core_type<tc>, window_params = [{transform_indices = @transform_0, window_bounds = array<i64: 8, 128>}, {pipeline_mode = #tpu.pipeline_mode<synchronous>, transform_indices = @transform_1, window_bounds = array<i64: 3, 128, 128>}, {pipeline_mode = #tpu.pipeline_mode<synchronous>, transform_indices = @transform_2, window_bounds = array<i64: 8, 128>}, {transform_indices = @transform_3, window_bounds = array<i64: 8, 128>}]} {
    %c0 = arith.constant 0 : index
    %c0_0 = arith.constant 0 : index
    %0 = vector.load %arg1[%c0, %c0_0] : memref<8x128xf32, #tpu.memory_space<vmem>>, vector<8x128xf32>
    %c0_1 = arith.constant 0 : index
    %c0_2 = arith.constant 0 : index
    %1 = vector.load %arg3[%c0_1, %c0_2] : memref<8x128xf32, #tpu.memory_space<vmem>>, vector<8x128xf32>
    %2 = vector.extract_strided_slice %1 {offsets = [0, 0], sizes = [1, 128], strides = [1, 1]} : vector<8x128xf32> to vector<1x128xf32>
    %3 = vector.extract_strided_slice %1 {offsets = [1, 0], sizes = [1, 128], strides = [1, 1]} : vector<8x128xf32> to vector<1x128xf32>
    %4 = vector.extract_strided_slice %1 {offsets = [2, 0], sizes = [1, 128], strides = [1, 1]} : vector<8x128xf32> to vector<1x128xf32>
    %c0_3 = arith.constant 0 : index
    %c0_4 = arith.constant 0 : index
    %c0_5 = arith.constant 0 : index
    %5 = vector.load %arg2[%c0_3, %c0_4, %c0_5] : memref<3x128x128xf32, #tpu.memory_space<vmem>>, vector<1x128x128xf32>
    %6 = vector.shape_cast %5 : vector<1x128x128xf32> to vector<128x128xf32>
    %cst = arith.constant dense<0.000000e+00> : vector<8x128xf32>
    %7 = tpu.matmul %0, %6, %cst {dimension_numbers = #tpu.dot_dimension_numbers<[1], [0], [0], [1], [0, 0, 1, 1], [], []>} : vector<8x128xf32>, vector<128x128xf32>, vector<8x128xf32> -> vector<8x128xf32>
    %8 = vector.broadcast %2 : vector<1x128xf32> to vector<8x128xf32>
    %9 = arith.addf %7, %8 : vector<8x128xf32>
    %cst_6 = arith.constant 0.000000e+00 : f32
    %10 = vector.broadcast %cst_6 : f32 to vector<8x128xf32>
    %11 = arith.maximumf %9, %10 : vector<8x128xf32>
    %c1 = arith.constant 1 : index
    %c0_7 = arith.constant 0 : index
    %c0_8 = arith.constant 0 : index
    %12 = vector.load %arg2[%c1, %c0_7, %c0_8] : memref<3x128x128xf32, #tpu.memory_space<vmem>>, vector<1x128x128xf32>
    %13 = vector.shape_cast %12 : vector<1x128x128xf32> to vector<128x128xf32>
    %cst_9 = arith.constant dense<0.000000e+00> : vector<8x128xf32>
    %14 = tpu.matmul %11, %13, %cst_9 {dimension_numbers = #tpu.dot_dimension_numbers<[1], [0], [0], [1], [0, 0, 1, 1], [], []>} : vector<8x128xf32>, vector<128x128xf32>, vector<8x128xf32> -> vector<8x128xf32>
    %15 = vector.broadcast %3 : vector<1x128xf32> to vector<8x128xf32>
    %16 = arith.addf %14, %15 : vector<8x128xf32>
    %cst_10 = arith.constant 0.000000e+00 : f32
    %17 = vector.broadcast %cst_10 : f32 to vector<8x128xf32>
    %18 = arith.maximumf %16, %17 : vector<8x128xf32>
    %c2 = arith.constant 2 : index
    %c0_11 = arith.constant 0 : index
    %c0_12 = arith.constant 0 : index
    %19 = vector.load %arg2[%c2, %c0_11, %c0_12] : memref<3x128x128xf32, #tpu.memory_space<vmem>>, vector<1x128x128xf32>
    %20 = vector.shape_cast %19 : vector<1x128x128xf32> to vector<128x128xf32>
    %cst_13 = arith.constant dense<0.000000e+00> : vector<8x128xf32>
    %21 = tpu.matmul %18, %20, %cst_13 {dimension_numbers = #tpu.dot_dimension_numbers<[1], [0], [0], [1], [0, 0, 1, 1], [], []>} : vector<8x128xf32>, vector<128x128xf32>, vector<8x128xf32> -> vector<8x128xf32>
    %22 = vector.broadcast %4 : vector<1x128xf32> to vector<8x128xf32>
    %23 = arith.addf %21, %22 : vector<8x128xf32>
    %c0_14 = arith.constant 0 : index
    %c0_15 = arith.constant 0 : index
    %24 = vector.load %arg4[%c0_14, %c0_15] : memref<8x128xf32, #tpu.memory_space<vmem>>, vector<8x128xf32>
    tpu.vector_store %arg4[%c0_14, %c0_15], %23 {strides = array<i32>} : memref<8x128xf32, #tpu.memory_space<vmem>>, vector<8x128xf32>,
    return
  }
  func.func @transform_0(%arg0: i32) -> (i32, i32) {
    %c0_i32 = arith.constant 0 : i32
    %c0_i32_0 = arith.constant 0 : i32
    return %arg0, %c0_i32 : i32, i32
  }
  func.func @transform_1(%arg0: i32) -> (i32, i32, i32) {
    %c0_i32 = arith.constant 0 : i32
    %c0_i32_0 = arith.constant 0 : i32
    %c0_i32_1 = arith.constant 0 : i32
    %c0_i32_2 = arith.constant 0 : i32
    return %c0_i32, %c0_i32_0, %c0_i32_1 : i32, i32, i32
  }
  func.func @transform_2(%arg0: i32) -> (i32, i32) {
    %c0_i32 = arith.constant 0 : i32
    %c0_i32_0 = arith.constant 0 : i32
    %c0_i32_1 = arith.constant 0 : i32
    return %c0_i32, %c0_i32_0 : i32, i32
  }
  func.func @transform_3(%arg0: i32) -> (i32, i32) {
    %c0_i32 = arith.constant 0 : i32
    %c0_i32_0 = arith.constant 0 : i32
    return %arg0, %c0_i32 : i32, i32
  }
}

</mosaic_0001>

<llo_original>
// kernel: qnet_forward.1
$region0: #{qnet_forward.1}
  #allocation0 [shape = 'u32[]', space=smem, size = 0x4, offset = 0x4, fixed_abs, tag = 'smem constant byte address 0x4 - core index']
  #allocation1 [shape = 'u32[72,128]{1,0:T(1,128)}', space=vmem, size = 0x9000, scoped, tag = 'internal scratch']
  %s0 = inlined_call_operand.vmem [shape: f32[8,128], index: 0, kind: input, shape index: {}]
  %s1 = inlined_call_operand.hbm [shape: f32[3,128,128], index: 1, kind: input, shape index: {}]
  %s2 = inlined_call_operand.vmem [shape: f32[8,128], index: 2, kind: input, shape index: {}]
  %s3 = inlined_call_operand.vmem [shape: f32[8,128], index: 3, kind: output, shape index: {}]
  %s4 = sld [smem:[#allocation0]]
  $region26: #{qnet_forward.1} parent=0
    _
  %s6 = ssub.s32 1, %s4
  %s7 = scalar_select 0, %s6, %s4
  $region1: #{qnet_forward.1} parent=0
    #allocation2 [shape = 'u8[196608]{0}', space=vmem, size = 0x30000, scoped, tag = 'input window, operand 1, single buffered']
    #allocation3 [shape = 's32[1]{0}', space=sflag, size = 0x4, scoped, tag = 'scoped memory for qnet_forward.1']
    %8 = vsyncpa [#allocation3], 0
    // Predicated region
    $region2: #{qnet_forward.1} parent=1 // pred_check
      _
    $region3: #{qnet_forward.1} parent=1 // pred_check_branch
      %10 = sbr.rel (0) target = $region5
    $region4: #{qnet_forward.1} parent=1 // pred_region
      _
    $region5: #{qnet_forward.1} parent=1 // pred_fallthru
      _
    // Predicated region
    $region6: #{qnet_forward.1} parent=1 // pred_check
      _
    $region7: #{qnet_forward.1} parent=1 // pred_check_branch
      %12 = sbr.rel (0) target = $region9
    $region8: #{qnet_forward.1} parent=1 // pred_region
      %14 = vsyncadd [#allocation3], 0
      %s15 = sshll.u32 %s1, 4
      %s16 = int_to_ptr.hbm [resolvable:$true] %s15
      %s17 = sshll.u32 [#allocation2], 4
      %s18 = int_to_ptr.vmem [resolvable:$true] %s17
      %23 = dma.hbm_to_vmem [thread:$0]  %s16, 6144, %s18, [#allocation3], 128, 128, 8
    $region9: #{qnet_forward.1} parent=1 // pred_fallthru
      _
    // Predicated region
    $region10: #{qnet_forward.1} parent=1 // pred_check
      _
    $region11: #{qnet_forward.1} parent=1 // pred_check_branch
      %25 = sbr.rel (0) target = $region13
    $region12: #{qnet_forward.1} parent=1 // pred_region
      _
    $region13: #{qnet_forward.1} parent=1 // pred_fallthru
      _
    // Predicated region
    $region14: #{qnet_forward.1} parent=1 // pred_check
      _
    $region15: #{qnet_forward.1} parent=1 // pred_check_branch
      %27 = sbr.rel (0) target = $region17
    $region16: #{qnet_forward.1} parent=1 // pred_region
      %29 = dma.done [#allocation3], 6144
    $region17: #{qnet_forward.1} parent=1 // pred_fallthru
      _
    %v30 = vld [vmem:[%s0] sm:$0xff]
    %v31 = vld [vmem:[%s2] sm:$0xff]
    %v32 = vld [vmem:[#allocation2] sm:$0xff]
    %v33 = vld [vmem:[#allocation2 + $0x8] sm:$0xff]
    %v34 = vld [vmem:[#allocation2 + $0x10] sm:$0xff]
    %v35 = vld [vmem:[#allocation2 + $0x18] sm:$0xff]
    %v36 = vld [vmem:[#allocation2 + $0x20] sm:$0xff]
    %v37 = vld [vmem:[#allocation2 + $0x28] sm:$0xff]
    %v38 = vld [vmem:[#allocation2 + $0x30] sm:$0xff]
    %v39 = vld [vmem:[#allocation2 + $0x38] sm:$0xff]
    %v40 = vld [vmem:[#allocation2 + $0x40] sm:$0xff]
    %v41 = vld [vmem:[#allocation2 + $0x48] sm:$0xff]
    %v42 = vld [vmem:[#allocation2 + $0x50] sm:$0xff]
    %v43 = vld [vmem:[#allocation2 + $0x58] sm:$0xff]
    %v44 = vld [vmem:[#allocation2 + $0x60] sm:$0xff]
    %v45 = vld [vmem:[#allocation2 + $0x68] sm:$0xff]
    %v46 = vld [vmem:[#allocation2 + $0x70] sm:$0xff]
    %v47 = vld [vmem:[#allocation2 + $0x78] sm:$0xff]
    %v48 = vperm.slane %v31, 0
    %49 = vmatpush.msra.mxu0 %v47
    %50 = vmatpush.msra.mxu0 %v46
    %51 = vmatpush.msra.mxu0 %v45
    %52 = vmatpush.msra.mxu0 %v44
    %53 = vmatpush.msra.mxu0 %v43
    %54 = vmatpush.msra.mxu0 %v42
    %55 = vmatpush.msra.mxu0 %v41
    %56 = vmatpush.msra.mxu0 %v40
    %57 = vmatpush.msra.mxu0 %v39
    %58 = vmatpush.msra.mxu0 %v38
    %59 = vmatpush.msra.mxu0 %v37
    %60 = vmatpush.msra.mxu0 %v36
    %61 = vmatpush.msra.mxu0 %v35
    %62 = vmatpush.msra.mxu0 %v34
    %63 = vmatpush.msra.mxu0 %v33
    %64 = vmatpush.msra.mxu0 %v32
    %65 = vmatmul.f32.gmra.mxu0 %v30
    %v66 = vpop.f32.mrf.mxu0
    %v67 = vadd.f32 %v48, %v66
    %68 = vdwg.mxu0
    %v69 = vmax.f32 %v67, 0.0
    %s70 = scalar_lea.vmem [#allocation2], 128
    %v71 = vld [vmem:[%s70] sm:$0xff]
    %v72 = vld [vmem:[%s70 + $0x8] sm:$0xff]
    %v73 = vld [vmem:[%s70 + $0x10] sm:$0xff]
    %v74 = vld [vmem:[%s70 + $0x18] sm:$0xff]
    %v75 = vld [vmem:[%s70 + $0x20] sm:$0xff]
    %v76 = vld [vmem:[%s70 + $0x28] sm:$0xff]
    %v77 = vld [vmem:[%s70 + $0x30] sm:$0xff]
    %v78 = vld [vmem:[%s70 + $0x38] sm:$0xff]
    %v79 = vld [vmem:[%s70 + $0x40] sm:$0xff]
    %v80 = vld [vmem:[%s70 + $0x48] sm:$0xff]
    %v81 = vld [vmem:[%s70 + $0x50] sm:$0xff]
    %v82 = vld [vmem:[%s70 + $0x58] sm:$0xff]
    %v83 = vld [vmem:[%s70 + $0x60] sm:$0xff]
    %v84 = vld [vmem:[%s70 + $0x68] sm:$0xff]
    %v85 = vld [vmem:[%s70 + $0x70] sm:$0xff]
    %v86 = vld [vmem:[%s70 + $0x78] sm:$0xff]
    %v87 = vperm.slane %v31, 1
    %88 = vmatpush.msra.mxu0 %v86
    %89 = vmatpush.msra.mxu0 %v85
    %90 = vmatpush.msra.mxu0 %v84
    %91 = vmatpush.msra.mxu0 %v83
    %92 = vmatpush.msra.mxu0 %v82
    %93 = vmatpush.msra.mxu0 %v81
    %94 = vmatpush.msra.mxu0 %v80
    %95 = vmatpush.msra.mxu0 %v79
    %96 = vmatpush.msra.mxu0 %v78
    %97 = vmatpush.msra.mxu0 %v77
    %98 = vmatpush.msra.mxu0 %v76
    %99 = vmatpush.msra.mxu0 %v75
    %100 = vmatpush.msra.mxu0 %v74
    %101 = vmatpush.msra.mxu0 %v73
    %102 = vmatpush.msra.mxu0 %v72
    %103 = vmatpush.msra.mxu0 %v71
    %104 = vmatmul.f32.gmra.mxu0 %v69
    %v105 = vpop.f32.mrf.mxu0
    %v106 = vadd.f32 %v87, %v105
    %107 = vdwg.mxu0
    %v108 = vmax.f32 %v106, 0.0
    %s109 = scalar_lea.vmem [#allocation2], 256
    %v110 = vld [vmem:[%s109] sm:$0xff]
    %v111 = vld [vmem:[%s109 + $0x8] sm:$0xff]
    %v112 = vld [vmem:[%s109 + $0x10] sm:$0xff]
    %v113 = vld [vmem:[%s109 + $0x18] sm:$0xff]
    %v114 = vld [vmem:[%s109 + $0x20] sm:$0xff]
    %v115 = vld [vmem:[%s109 + $0x28] sm:$0xff]
    %v116 = vld [vmem:[%s109 + $0x30] sm:$0xff]
    %v117 = vld [vmem:[%s109 + $0x38] sm:$0xff]
    %v118 = vld [vmem:[%s109 + $0x40] sm:$0xff]
    %v119 = vld [vmem:[%s109 + $0x48] sm:$0xff]
    %v120 = vld [vmem:[%s109 + $0x50] sm:$0xff]
    %v121 = vld [vmem:[%s109 + $0x58] sm:$0xff]
    %v122 = vld [vmem:[%s109 + $0x60] sm:$0xff]
    %v123 = vld [vmem:[%s109 + $0x68] sm:$0xff]
    %v124 = vld [vmem:[%s109 + $0x70] sm:$0xff]
    %v125 = vld [vmem:[%s109 + $0x78] sm:$0xff]
    %v126 = vperm.slane %v31, 2
    %127 = vmatpush.msra.mxu0 %v125
    %128 = vmatpush.msra.mxu0 %v124
    %129 = vmatpush.msra.mxu0 %v123
    %130 = vmatpush.msra.mxu0 %v122
    %131 = vmatpush.msra.mxu0 %v121
    %132 = vmatpush.msra.mxu0 %v120
    %133 = vmatpush.msra.mxu0 %v119
    %134 = vmatpush.msra.mxu0 %v118
    %135 = vmatpush.msra.mxu0 %v117
    %136 = vmatpush.msra.mxu0 %v116
    %137 = vmatpush.msra.mxu0 %v115
    %138 = vmatpush.msra.mxu0 %v114
    %139 = vmatpush.msra.mxu0 %v113
    %140 = vmatpush.msra.mxu0 %v112
    %141 = vmatpush.msra.mxu0 %v111
    %142 = vmatpush.msra.mxu0 %v110
    %143 = vmatmul.f32.gmra.mxu0 %v108
    %v144 = vpop.f32.mrf.mxu0
    %v145 = vadd.f32 %v126, %v144
    %146 = vdwg.mxu0
    %147 = vst [vmem:[%s3] sm:$0xff] %v145
    // Predicated region
    $region18: #{qnet_forward.1} parent=1 // pred_check
      _
    $region19: #{qnet_forward.1} parent=1 // pred_check_branch
      %149 = sbr.rel (0) target = $region21
    $region20: #{qnet_forward.1} parent=1 // pred_region
      _
    $region21: #{qnet_forward.1} parent=1 // pred_fallthru
      _
    // Predicated region
    $region22: #{qnet_forward.1} parent=1 // pred_check
      _
    $region23: #{qnet_forward.1} parent=1 // pred_check_branch
      %151 = sbr.rel (0) target = $region25
    $region24: #{qnet_forward.1} parent=1 // pred_region
      _
    $region25: #{qnet_forward.1} parent=1 // pred_fallthru
      _
    %152 = vsyncpa [#allocation3], 1

</llo_original>
